<compile_context>
chip_gen: v5e
topology: v5e:2x2
jax: 0.10.0
libtpu: 0.0.40
codegen_flags: <defaults>
</compile_context>

<pallas_src>
import functools

import jax
import jax.numpy as jnp
from jax.experimental import pallas as pl
from jax.experimental.pallas import tpu as pltpu


def _round_up(a: int, b: int) -> int:
    return ((a + b - 1) // b) * b


def _cdiv(a: int, b: int) -> int:
    return -(-a // b)


def _vmem_tile_bytes(rows: int, cols: int, itemsize: int) -> int:
    """Bytes one (rows, cols) tile occupies in VMEM (sublane/lane rounded)."""
    sub = max(1, 32 // itemsize)
    return _round_up(max(rows, 1), sub) * _round_up(max(cols, 1), 128) * itemsize


def _tpu_vmem_capacity_bytes() -> int:
    try:
        info = pltpu.get_tpu_info()
        cap = int(getattr(info, "vmem_capacity_bytes", 0))
        if cap > 0:
            return cap
    except Exception:
        pass
    return 64 * 1024 * 1024  # conservative (v7x-per-TC sized) fallback


def _has_two_tensorcores() -> bool:
    """True on parts where one JAX device spans 2 TensorCores (v4/v5p megacore, v7x)."""
    try:
        kind = jax.devices()[0].device_kind.lower()
    except Exception:
        return False
    if "v4" in kind or "v7" in kind or "7x" in kind:
        return True
    if "v5" in kind and "lite" not in kind and "5e" not in kind:
        return True  # v5p megacore
    return False


def _patch_embed_kernel(p_ref, w_ref, b_ref, o_ref):
    # p_ref: (tm, K)  patch-matrix tile (compute dtype)
    # w_ref: (K, tn)  projection-weight tile (compute dtype, VMEM-resident if tn == N)
    # b_ref: (1, tn)  bias tile (float32)
    # o_ref: (tm, tn) output tile (x.dtype)
    acc = jnp.dot(p_ref[...], w_ref[...], preferred_element_type=jnp.float32)
    o_ref[...] = (acc + b_ref[...]).astype(o_ref.dtype)


@functools.partial(jax.jit, static_argnames=("patch_size", "compute_dtype"))
def patch_embed_forward(x, weight, bias, *, patch_size, compute_dtype=jnp.bfloat16):
    """PatchEmbed.forward: Conv2d(k=stride=patch) -> flatten(2) -> transpose(1, 2)."""
    B, C, H, W = x.shape
    ph = pw = patch_size
    if H % ph != 0 or W % pw != 0:
        raise ValueError("Input image size doesn't match model patch size.")
    gh, gw = H // ph, W // pw
    num_patches = gh * gw
    N = weight.shape[0]          # embed_dim
    K = C * ph * pw
    M = B * num_patches

    # --- im2col: single fused XLA pass (transpose + compute-dtype cast), no padding ----
    # (B, C, gh, ph, gw, pw) -> (B, gh, gw, C, ph, pw) -> (M, K); K ordered (C, ph, pw)
    # to match PyTorch Conv2d weight flattening.
    patches = (x.reshape(B, C, gh, ph, gw, pw)
                 .transpose(0, 2, 4, 1, 3, 5)
                 .reshape(M, K)
                 .astype(compute_dtype))
    w_mat = weight.reshape(N, K).T.astype(compute_dtype)      # (K, N)
    b_row = bias.reshape(1, N).astype(jnp.float32)            # bias stays fp32

    csize = jnp.dtype(compute_dtype).itemsize
    osize = jnp.dtype(x.dtype).itemsize
    sub = 16 if csize == 2 else 8                              # bf16 packs 2 rows/sublane
    lane = 128

    # --- generation-aware VMEM planning ------------------------------------------------
    vmem_cap = _tpu_vmem_capacity_bytes()
    budget = max(16 << 20, min(int(vmem_cap * 0.6), 96 << 20))
    multi_tc = _has_two_tensorcores()

    def a_out_row_bytes(tn_):
        # double-buffered A row + double-buffered out row
        return 2 * _round_up(K, lane) * csize + 2 * _round_up(tn_, lane) * osize

    # Prefer the whole (K, N) weight + bias resident in VMEM (fetched once, no re-DMA).
    w_full_bytes = 2 * _vmem_tile_bytes(K, N, csize) + 2 * _vmem_tile_bytes(1, N, 4)
    if w_full_bytes + sub * a_out_row_bytes(N) <= budget:
        tn = N
    else:
        # Fallback: tile N in 128-lane multiples (rare: only for very large K*N).
        tn = lane
        cand = min(_round_up(N, lane), 4096)
        while cand >= lane:
            wb = 2 * _vmem_tile_bytes(K, cand, csize) + 2 * _vmem_tile_bytes(1, cand, 4)
            if wb + sub * a_out_row_bytes(cand) <= budget:
                tn = cand
                break
            cand -= lane

    w_bytes = 2 * _vmem_tile_bytes(K, tn, csize) + 2 * _vmem_tile_bytes(1, tn, 4)
    row_bytes = a_out_row_bytes(tn)
    tm_cap = max(sub, ((budget - w_bytes) // max(row_bytes, 1)) // sub * sub)

    tm = min(1024, tm_cap)
    if tm >= M:
        tm = M                       # single M block; block == full dim is always legal
    else:
        tm = max(sub, (tm // sub) * sub)
    grid_m = _cdiv(M, tm)

    # Only split a single M block in two where a second TensorCore exists to take it.
    if multi_tc and grid_m == 1 and M > sub:
        tm = max(sub, _round_up(_cdiv(M, 2), sub))
        grid_m = _cdiv(M, tm)

    grid_n = _cdiv(N, tn)

    # Actual double-buffered footprint -> explicit scoped-VMEM limit (v5e default is 16 MiB).
    footprint = (2 * _vmem_tile_bytes(tm, K, csize)
                 + 2 * _vmem_tile_bytes(K, tn, csize)
                 + 2 * _vmem_tile_bytes(1, tn, 4)
                 + 2 * _vmem_tile_bytes(tm, tn, osize))
    vmem_limit = min(int(vmem_cap * 0.9), max(footprint + (4 << 20), 32 << 20))

    cost = pl.CostEstimate(
        flops=2 * M * K * N,
        transcendentals=0,
        bytes_accessed=(M * K * csize + K * N * csize + N * 4 + M * N * osize),
    )

    # Grid is (N-tiles, M-tiles): the inner (fast) axis is M, so the weight/bias block
    # index is constant across the inner sweep -> weight read from HBM exactly once per
    # N tile (once total in the common full-N-resident case).
    out_flat = pl.pallas_call(
        _patch_embed_kernel,
        out_shape=jax.ShapeDtypeStruct((M, N), x.dtype),
        grid_spec=pltpu.PrefetchScalarGridSpec(
            num_scalar_prefetch=0,
            grid=(grid_n, grid_m),
            in_specs=[
                pl.BlockSpec((tm, K), lambda j, i: (i, 0)),
                pl.BlockSpec((K, tn), lambda j, i: (0, j)),
                pl.BlockSpec((1, tn), lambda j, i: (0, j)),
            ],
            out_specs=pl.BlockSpec((tm, tn), lambda j, i: (i, j)),
        ),
        compiler_params=pltpu.CompilerParams(
            dimension_semantics=("parallel", "parallel"),
            vmem_limit_bytes=int(vmem_limit),
        ),
        cost_estimate=cost,
    )(patches, w_mat, b_row)

    # Exact (M, N) output: reshape is metadata-only, no trailing slice copy.
    return out_flat.reshape(B, num_patches, N)


if __name__ == "__main__":
    # Small shapes consistent with the module: img_size=16, patch_size=4,
    # in_chans=4, embed_dim=32, batch=2  ->  num_patches = (16/4)^2 = 16, M = 32.
    B, C, H, W = 2, 4, 16, 16
    patch_size = 4
    embed_dim = 32

    key = jax.random.PRNGKey(0)
    kx, kw, kb = jax.random.split(key, 3)

    x = jax.random.normal(kx, (B, C, H, W), dtype=jnp.float32)
    # Synthetic Conv2d parameters (shapes as in nn.Conv2d(C, embed_dim, k=stride=patch)).
    weight = jax.random.normal(kw, (embed_dim, C, patch_size, patch_size),
                               dtype=jnp.float32) * 0.02
    bias = jax.random.normal(kb, (embed_dim,), dtype=jnp.float32) * 0.02

    # bf16 MXU path (fp32 accumulation) - the default / recommended config.
    out = patch_embed_forward(x, weight, bias, patch_size=patch_size)
    out = jax.block_until_ready(out)

    # Plain-JAX reference of the same conv-as-matmul math.
    gh, gw = H // patch_size, W // patch_size
    ref_patches = x.reshape(B, C, gh, patch_size, gw, patch_size).transpose(0, 2, 4, 1, 3, 5)
    ref_patches = ref_patches.reshape(B * gh * gw, C * patch_size * patch_size)
    ref = (ref_patches @ weight.reshape(embed_dim, -1).T + bias).reshape(B, gh * gw, embed_dim)

    assert out.shape == (B, gh * gw, embed_dim)
    assert jnp.allclose(out, ref, atol=2e-2, rtol=2e-2), \
        float(jnp.max(jnp.abs(out - ref)))

    # Strict fp32 check of the same kernel path.
    out_f32 = patch_embed_forward(x, weight, bias, patch_size=patch_size,
                                  compute_dtype=jnp.float32)
    out_f32 = jax.block_until_ready(out_f32)
    assert jnp.allclose(out_f32, ref, atol=1e-4, rtol=1e-4), \
        float(jnp.max(jnp.abs(out_f32 - ref)))

    print("KERNEL_OK")
</pallas_src>

<mosaic_0001>
module attributes {stable_mosaic.version = 11 : i64} {
  func.func @_patch_embed_kernel(%arg0: i32, %arg1: i32, %arg2: memref<32x64xbf16, #tpu.memory_space<vmem>>, %arg3: memref<64x32xbf16, #tpu.memory_space<vmem>>, %arg4: memref<1x32xf32, #tpu.memory_space<vmem>>, %arg5: memref<32x32xf32, #tpu.memory_space<vmem>>) attributes {dimension_semantics = [#tpu.dimension_semantics<parallel>, #tpu.dimension_semantics<parallel>], iteration_bounds = array<i64: 1, 1>, scalar_prefetch = 0 : i64, scratch_operands = 0 : i64, tpu.core_type = #tpu.core_type<tc>, window_params = [{transform_indices = @transform_0, window_bounds = array<i64: 32, 64>}, {transform_indices = @transform_1, window_bounds = array<i64: 64, 32>}, {transform_indices = @transform_2, window_bounds = array<i64: 1, 32>}, {transform_indices = @transform_3, window_bounds = array<i64: 32, 32>}]} {
    %c0 = arith.constant 0 : index
    %c0_0 = arith.constant 0 : index
    %0 = vector.load %arg2[%c0, %c0_0] : memref<32x64xbf16, #tpu.memory_space<vmem>>, vector<32x64xbf16>
    %c0_1 = arith.constant 0 : index
    %c0_2 = arith.constant 0 : index
    %1 = vector.load %arg3[%c0_1, %c0_2] : memref<64x32xbf16, #tpu.memory_space<vmem>>, vector<64x32xbf16>
    %cst = arith.constant dense<0.000000e+00> : vector<32x32xf32>
    %2 = tpu.matmul %0, %1, %cst {dimension_numbers = #tpu.dot_dimension_numbers<[1], [0], [0], [1], [0, 0, 1, 1], [], []>} : vector<32x64xbf16>, vector<64x32xbf16>, vector<32x32xf32> -> vector<32x32xf32>
    %c0_3 = arith.constant 0 : index
    %c0_4 = arith.constant 0 : index
    %3 = vector.load %arg4[%c0_3, %c0_4] : memref<1x32xf32, #tpu.memory_space<vmem>>, vector<1x32xf32>
    %4 = vector.broadcast %3 : vector<1x32xf32> to vector<32x32xf32>
    %5 = arith.addf %2, %4 : vector<32x32xf32>
    %c0_5 = arith.constant 0 : index
    %c0_6 = arith.constant 0 : index
    %6 = vector.load %arg5[%c0_5, %c0_6] : memref<32x32xf32, #tpu.memory_space<vmem>>, vector<32x32xf32>
    tpu.vector_store %arg5[%c0_5, %c0_6], %5 {strides = array<i32>} : memref<32x32xf32, #tpu.memory_space<vmem>>, vector<32x32xf32>,
    return
  }
  func.func @transform_0(%arg0: i32, %arg1: i32) -> (i32, i32) {
    %c0_i32 = arith.constant 0 : i32
    %c0_i32_0 = arith.constant 0 : i32
    return %arg1, %c0_i32 : i32, i32
  }
  func.func @transform_1(%arg0: i32, %arg1: i32) -> (i32, i32) {
    %c0_i32 = arith.constant 0 : i32
    %c0_i32_0 = arith.constant 0 : i32
    return %c0_i32, %arg0 : i32, i32
  }
  func.func @transform_2(%arg0: i32, %arg1: i32) -> (i32, i32) {
    %c0_i32 = arith.constant 0 : i32
    %c0_i32_0 = arith.constant 0 : i32
    return %c0_i32, %arg0 : i32, i32
  }
  func.func @transform_3(%arg0: i32, %arg1: i32) -> (i32, i32) {
    %c0_i32 = arith.constant 0 : i32
    return %arg1, %arg0 : i32, i32
  }
}

</mosaic_0001>

<llo_original>
// kernel: patch_embed_forward.1
$region0: #{patch_embed_forward.1}
  #allocation0 [shape = 'u32[]', space=smem, size = 0x4, offset = 0x4, fixed_abs, tag = 'smem constant byte address 0x4 - core index']
  #allocation1 [shape = 'u32[72,128]{1,0:T(1,128)}', space=vmem, size = 0x9000, scoped, tag = 'internal scratch']
  %s0 = inlined_call_operand.vmem [shape: bf16[32,64], index: 0, kind: input, shape index: {}]
  %s1 = inlined_call_operand.vmem [shape: bf16[64,32], index: 1, kind: input, shape index: {}]
  %s2 = inlined_call_operand.vmem [shape: f32[1,32], index: 2, kind: input, shape index: {}]
  %s3 = inlined_call_operand.hbm [shape: f32[32,32], index: 3, kind: output, shape index: {}]
  %s4 = sld [smem:[#allocation0]]
  $region22: #{patch_embed_forward.1} parent=0
    _
  %s6 = ssub.s32 1, %s4
  %s7 = scalar_select 0, %s6, %s4
  $region1: #{patch_embed_forward.1} parent=0
    #allocation2 [shape = 'u8[16384]{0}', space=vmem, size = 0x4000, scoped, tag = 'output window, operand 0, single buffered']
    #allocation3 [shape = 's32[1]{0}', space=sflag, size = 0x4, scoped, tag = 'scoped memory for patch_embed_forward.1']
    %8 = vsyncpa [#allocation3], 0
    // Predicated region
    $region2: #{patch_embed_forward.1} parent=1 // pred_check
      _
    $region3: #{patch_embed_forward.1} parent=1 // pred_check_branch
      %10 = sbr.rel (0) target = $region5
    $region4: #{patch_embed_forward.1} parent=1 // pred_region
      _
    $region5: #{patch_embed_forward.1} parent=1 // pred_fallthru
      _
    // Predicated region
    $region6: #{patch_embed_forward.1} parent=1 // pred_check
      _
    $region7: #{patch_embed_forward.1} parent=1 // pred_check_branch
      %12 = sbr.rel (0) target = $region9
    $region8: #{patch_embed_forward.1} parent=1 // pred_region
      _
    $region9: #{patch_embed_forward.1} parent=1 // pred_fallthru
      _
    // Predicated region
    $region10: #{patch_embed_forward.1} parent=1 // pred_check
      _
    $region11: #{patch_embed_forward.1} parent=1 // pred_check_branch
      %14 = sbr.rel (0) target = $region13
    $region12: #{patch_embed_forward.1} parent=1 // pred_region
      _
    $region13: #{patch_embed_forward.1} parent=1 // pred_fallthru
      _
    %v16 = vld [vmem:[%s0] sm:$0xf]
    %v17 = vld [vmem:[%s0 + $0x4] sm:$0xf]
    %v18 = vld [vmem:[%s0 + $0x8] sm:$0xf]
    %v19 = vld [vmem:[%s0 + $0xc] sm:$0xf]
    %v20 = vld [vmem:[%s1] sm:$0xf]
    %v21 = vld [vmem:[%s1 + $0x4] sm:$0xf]
    %v22 = vld [vmem:[%s1 + $0x8] sm:$0xf]
    %v23 = vld [vmem:[%s1 + $0xc] sm:$0xf]
    %v24 = vld [vmem:[%s1 + $0x10] sm:$0xf]
    %v25 = vld [vmem:[%s1 + $0x14] sm:$0xf]
    %v26 = vld [vmem:[%s1 + $0x18] sm:$0xf]
    %v27 = vld [vmem:[%s1 + $0x1c] sm:$0xf]
    %v28 = vld [vmem:[%s2] sm:$0x1]
    %v30 = vperm.slane %v28, 0
    %v36 = vunpack.c.l.b16 %v16
    %v37 = vunpack.c.l.b16 %v17
    %v38 = vunpack.c.l.b16 %v18
    %v39 = vunpack.c.l.b16 %v19
    %v40 = vpack.c.b16 %v37, %v36
    %v41 = vpack.c.b16 %v39, %v38
    %v50 = vunpack.c.l.b16 %v20
    %v51 = vunpack.c.l.b16 %v21
    %v52 = vunpack.c.l.b16 %v22
    %v53 = vunpack.c.l.b16 %v23
    %v54 = vunpack.c.l.b16 %v24
    %v55 = vunpack.c.l.b16 %v25
    %v56 = vunpack.c.l.b16 %v26
    %v57 = vunpack.c.l.b16 %v27
    %v58 = vpack.c.b16 %v51, %v50
    %v59 = vpack.c.b16 %v53, %v52
    %v60 = vpack.c.b16 %v55, %v54
    %v61 = vpack.c.b16 %v57, %v56
    %vm66 = vcmask 523264
    %v68 = vsel %vm66, %v40, 0
    %v71 = vsel %vm66, %v41, 0
    %73 = vmatpush.bf16.msra.mxu0 0
    %74 = vmatpush.bf16.msra.mxu0 0
    %75 = vmatpush.bf16.msra.mxu0 0
    %76 = vmatpush.bf16.msra.mxu0 0
    %77 = vmatpush.bf16.msra.mxu0 %v61
    %78 = vmatpush.bf16.msra.mxu0 %v60
    %79 = vmatpush.bf16.msra.mxu0 %v59
    %80 = vmatpush.bf16.msra.mxu0 %v58
    %81 = vmatmul.bf16.gmra.mxu0 %v68
    %v82 = vpop.f32.mrf.mxu0
    %v83 = vadd.f32 %v30, %v82
    %v84 = vpop.f32.mrf.mxu0
    %v85 = vadd.f32 %v30, %v84
    %86 = vmatmul.bf16.gmra.mxu0 %v71
    %v87 = vpop.f32.mrf.mxu0
    %v88 = vadd.f32 %v30, %v87
    %v89 = vpop.f32.mrf.mxu0
    %v90 = vadd.f32 %v30, %v89
    %91 = vdwg.mxu0
    %vm92 = vcmask 261120
    %93 = vst.msk [vmem:[#allocation2] sm:$0xff] %vm92, %v83
    %94 = vst.msk [vmem:[#allocation2 + $0x8] sm:$0xff] %vm92, %v85
    %95 = vst.msk [vmem:[#allocation2 + $0x10] sm:$0xff] %vm92, %v88
    %96 = vst.msk [vmem:[#allocation2 + $0x18] sm:$0xff] %vm92, %v90
    // Predicated region
    $region14: #{patch_embed_forward.1} parent=1 // pred_check
      _
    $region15: #{patch_embed_forward.1} parent=1 // pred_check_branch
      %98 = sbr.rel (0) target = $region17
    $region16: #{patch_embed_forward.1} parent=1 // pred_region
      %100 = vsyncadd [#allocation3], 0
      %s101 = sshll.u32 [#allocation2], 4
      %s102 = int_to_ptr.vmem [resolvable:$true] %s101
      %s103 = sshll.u32 %s3, 4
      %s104 = int_to_ptr.hbm [resolvable:$true] %s103
      %109 = dma.vmem_to_hbm [thread:$0]  %s102, 512, %s104, [#allocation3], 128, 128, 8
    $region17: #{patch_embed_forward.1} parent=1 // pred_fallthru
      _
    // Predicated region
    $region18: #{patch_embed_forward.1} parent=1 // pred_check
      _
    $region19: #{patch_embed_forward.1} parent=1 // pred_check_branch
      %111 = sbr.rel (0) target = $region21
    $region20: #{patch_embed_forward.1} parent=1 // pred_region
      %113 = dma.done [#allocation3], 512
    $region21: #{patch_embed_forward.1} parent=1 // pred_fallthru
      _
    %114 = vsyncpa [#allocation3], 1

</llo_original>
